<compile_context>
chip_gen: v7x
topology: tpu7x:2x2x1
jax: 0.10.0
libtpu: 0.0.40
codegen_flags: <defaults>
</compile_context>

<pallas_src>
import jax
import jax.numpy as jnp
from jax import lax
from jax.experimental import pallas as pl
from jax.experimental.pallas import tpu as pltpu


# ---------------------------------------------------------------------------
# helpers
# ---------------------------------------------------------------------------

def _is_pow2(n):
    return n > 0 and (n & (n - 1)) == 0


def _vmem_capacity_bytes():
    try:
        cap = int(pltpu.get_tpu_info().vmem_capacity_bytes)
        if cap > 0:
            return cap
    except Exception:
        pass
    return 64 * 1024 * 1024  # conservative fallback (v7x per-TC VMEM)


def _default_target_bytes(vmem_cap):
    budget = (vmem_cap * 3) // 4
    return int(min(2 * 1024 * 1024, max(256 * 1024, budget // 16)))


def _vmem_limit(est_bytes, vmem_cap):
    lo = 32 * 1024 * 1024
    hi = max(lo, vmem_cap - 8 * 1024 * 1024)
    return int(min(max(2 * est_bytes, lo), hi))


# ---------------------------------------------------------------------------
# flattened-lane kernel: block = (bnc, g * H*W); whole images live on the lane axis
# ---------------------------------------------------------------------------

def _make_flat_kernel(W, L_img, g):
    """[1,2,1]x[1,2,1]/16 blur, reflect101 borders, on a (bnc, g*L_img) block where
    each row holds g full images flattened to H*W lanes."""
    Lg = g * L_img

    def _mod(a, n):
        return (a & (n - 1)) if _is_pow2(n) else (a % n)

    def kernel(x_ref, o_ref):
        x = x_ref[...].astype(jnp.float32)                     # (bnc, Lg)

        # (1, Lg) boundary masks — identical for every sublane row; broadcast in where.
        j = lax.broadcasted_iota(jnp.int32, (1, Lg), 1)
        jl = _mod(j, L_img) if g > 1 else j                    # position within image
        col = _mod(jl, W)
        first_col = col == 0
        last_col = col == W - 1
        first_row = jl < W
        last_row = jl >= L_img - W

        # Horizontal [1,2,1] pass; roll wrap / image-crossing values are overridden
        # by the first_col / last_col selects (reflect101: x[-1] -> x[1]).
        xp = pltpu.roll(x, 1, axis=1)                          # x[j-1]
        xn = pltpu.roll(x, Lg - 1, axis=1)                     # x[j+1]
        left = jnp.where(first_col, xn, xp)
        right = jnp.where(last_col, xp, xn)
        h = left + x + x + right

        # Vertical [1,2,1] pass; same trick with +-W shifts along the lane axis.
        hu = pltpu.roll(h, W, axis=1)                          # h[j-W]
        hd = pltpu.roll(h, Lg - W, axis=1)                     # h[j+W]
        up = jnp.where(first_row, hd, hu)                      # reflect: row -1 -> row 1
        down = jnp.where(last_row, hu, hd)                     # reflect: row H  -> row H-2
        o_ref[...] = ((up + h + h + down) * (1.0 / 16.0)).astype(o_ref.dtype)

    return kernel


def _pick_rows_per_step(R, Lg, itemsize, target_bytes):
    b = max(1, target_bytes // max(1, Lg * itemsize))
    if b < R:
        b = max(8, (b // 8) * 8)
    else:
        b = R
        # Keep >= 2 grid steps when splitting on an 8-row boundary is free
        # (v7x shards the parallel grid across its 2 TensorCores).
        if R >= 16:
            b = min(b, (((R + 1) // 2) + 7) // 8 * 8)
    return min(b, R)


def _blur_flat(x, block_nc, target_bytes, vmem_cap):
    N, C, H, W = x.shape
    NC, L = N * C, H * W
    itemsize = x.dtype.itemsize

    # Tiny pyramid levels: fold a power-of-two group of channels onto the lane axis
    # so the lane dim is >= 128 (lane-dense, unmasked stores).
    g = 1
    while g * L < 128 and NC % (2 * g) == 0 and 2 * g <= NC:
        g *= 2
    R, Lg = NC // g, g * L

    xf = x.reshape(R, Lg)                                      # free reshape (contiguous)

    if block_nc is None:
        bnc = _pick_rows_per_step(R, Lg, itemsize, target_bytes)
    else:
        bnc = min(int(block_nc), R)

    block_bytes = bnc * Lg * itemsize
    # double-buffered in/out + ~8 live f32 temporaries (roll-based kernel).
    est = 4 * block_bytes + 8 * bnc * Lg * 4
    vmem_limit = _vmem_limit(est, vmem_cap)

    out = pl.pallas_call(
        _make_flat_kernel(W, L, g),
        out_shape=jax.ShapeDtypeStruct((R, Lg), x.dtype),
        grid_spec=pltpu.PrefetchScalarGridSpec(
            num_scalar_prefetch=0,
            grid=(pl.cdiv(R, bnc),),
            in_specs=[pl.BlockSpec((bnc, Lg), lambda i: (i, 0))],
            out_specs=pl.BlockSpec((bnc, Lg), lambda i: (i, 0)),
        ),
        compiler_params=pltpu.CompilerParams(
            dimension_semantics=("parallel",),
            vmem_limit_bytes=vmem_limit,
        ),
    )(xf)
    return out.reshape(N, C, H, W)


# ---------------------------------------------------------------------------
# row-tiled kernel with 1-row halos (for large feature maps): block = (bnc, th, W)
# ---------------------------------------------------------------------------

def _make_rows_kernel(W, th):
    def kernel(x_ref, up_ref, dn_ref, o_ref):
        r = pl.program_id(1)
        last = pl.num_programs(1) - 1
        x = x_ref[...].astype(jnp.float32)                     # (bnc, th, W)

        jc = lax.broadcasted_iota(jnp.int32, (1, 1, W), 2)
        first_col = jc == 0
        last_col = jc == W - 1

        def horiz(a):
            ap = pltpu.roll(a, 1, axis=2)                      # a[..., j-1]
            an = pltpu.roll(a, W - 1, axis=2)                  # a[..., j+1]
            left = jnp.where(first_col, an, ap)
            right = jnp.where(last_col, ap, an)
            return left + a + a + right

        h = horiz(x)                                           # (bnc, th, W)
        # Horizontally-filtered single halo rows from the neighbouring row blocks.
        # Their values are unused (replaced by in-block reflection) at r==0 / r==last.
        uh = horiz(up_ref[:, 7:8, :].astype(jnp.float32))      # global row r*th - 1
        dh = horiz(dn_ref[:, 0:1, :].astype(jnp.float32))      # global row (r+1)*th

        hu = pltpu.roll(h, 1, axis=1)                          # h[i-1]; row 0 wraps
        hd = pltpu.roll(h, th - 1, axis=1)                     # h[i+1]; row th-1 wraps
        ir = lax.broadcasted_iota(jnp.int32, (1, th, 1), 1)
        top = ir == 0
        bot = ir == th - 1
        # hd[row 0] == h[row 1] and hu[row th-1] == h[row th-2]: exactly the reflect101
        # values needed at the image top / bottom edges.
        up = jnp.where(top, jnp.where(r == 0, hd, uh), hu)
        down = jnp.where(bot, jnp.where(r == last, hu, dh), hd)
        o_ref[...] = ((up + h + h + down) * (1.0 / 16.0)).astype(o_ref.dtype)

    return kernel


def _blur_rows(x, block_nc, block_h, target_bytes, vmem_cap):
    N, C, H, W = x.shape
    NC = N * C
    itemsize = x.dtype.itemsize
    assert H % 8 == 0, "row-tiled path requires H % 8 == 0"

    if block_h is None:
        th = 8
        for cand in range(8, H + 1, 8):
            if H % cand == 0 and cand * W * itemsize <= target_bytes:
                th = cand
    else:
        th = int(block_h)
        assert th % 8 == 0 and H % th == 0, "block_h must be a multiple of 8 dividing H"
    thb = th // 8
    nh = H // 8

    if block_nc is None:
        bnc = max(1, min(NC, target_bytes // max(1, th * W * itemsize)))
    else:
        bnc = min(int(block_nc), NC)

    x3 = x.reshape(NC, H, W)
    main_bytes = bnc * th * W * itemsize
    halo_bytes = bnc * 8 * W * itemsize
    est = 4 * main_bytes + 8 * halo_bytes + 8 * bnc * th * W * 4
    vmem_limit = _vmem_limit(est, vmem_cap)

    out = pl.pallas_call(
        _make_rows_kernel(W, th),
        out_shape=jax.ShapeDtypeStruct((NC, H, W), x.dtype),
        grid_spec=pltpu.PrefetchScalarGridSpec(
            num_scalar_prefetch=0,
            grid=(pl.cdiv(NC, bnc), H // th),
            in_specs=[
                pl.BlockSpec((bnc, th, W), lambda c, r: (c, r, 0)),
                # 8-row halo above / below the current row block (clamped at the edges;
                # clamped values are unused because the kernel reflects in-block there).
                pl.BlockSpec((bnc, 8, W),
                             lambda c, r: (c, jnp.maximum(r * thb - 1, 0), 0)),
                pl.BlockSpec((bnc, 8, W),
                             lambda c, r: (c, jnp.minimum((r + 1) * thb, nh - 1), 0)),
            ],
            out_specs=pl.BlockSpec((bnc, th, W), lambda c, r: (c, r, 0)),
        ),
        compiler_params=pltpu.CompilerParams(
            dimension_semantics=("parallel", "parallel"),
            vmem_limit_bytes=vmem_limit,
        ),
    )(x3, x3, x3)
    return out.reshape(N, C, H, W)


# ---------------------------------------------------------------------------
# public entry point
# ---------------------------------------------------------------------------

def blur(x, *, block_nc=None, block_h=None, target_block_bytes=None):
    """x: (N, C, H, W). Returns the [1,2,1]^2/16 depthwise blur with reflect borders."""
    N, C, H, W = x.shape
    assert H >= 2 and W >= 2, "reflect padding requires H >= 2 and W >= 2"
    L = H * W
    itemsize = x.dtype.itemsize

    vmem_cap = _vmem_capacity_bytes()
    if target_block_bytes is None:
        target_block_bytes = _default_target_bytes(vmem_cap)

    use_rows = (block_h is not None) or (
        8 * L * itemsize > target_block_bytes and H % 8 == 0 and H >= 16)
    # TODO(synk): maps with huge H*W but H % 8 != 0 fall back to the flattened path and
    # may exceed the VMEM budget; add an Element/manual-DMA halo for that rare case.

    if use_rows:
        return _blur_rows(x, block_nc, block_h, target_block_bytes, vmem_cap)
    return _blur_flat(x, block_nc, target_block_bytes, vmem_cap)


# ---------------------------------------------------------------------------
# reference (verification only)
# ---------------------------------------------------------------------------

def _reference_blur(x):
    N, C, H, W = x.shape
    f = jnp.array([1.0, 2.0, 1.0], jnp.float32)
    k2d = f[None, :] * f[:, None]
    k2d = k2d / jnp.sum(k2d)
    k = jnp.broadcast_to(k2d[None, None], (C, 1, 3, 3))
    xp = jnp.pad(x, ((0, 0), (0, 0), (1, 1), (1, 1)), mode="reflect")
    return lax.conv_general_dilated(
        xp.astype(jnp.float32), k,
        window_strides=(1, 1), padding="VALID",
        dimension_numbers=("NCHW", "OIHW", "NCHW"),
        feature_group_count=C,
    ).astype(x.dtype)


if __name__ == "__main__":
    key = jax.random.PRNGKey(0)
    k1, k2, k3 = jax.random.split(key, 3)

    # 1) typical small map -> flattened lane layout
    x1 = jax.random.normal(k1, (2, 4, 16, 16), dtype=jnp.float32)
    o1 = jax.block_until_ready(jax.jit(blur)(x1))
    r1 = _reference_blur(x1)
    assert o1.shape == x1.shape and o1.dtype == x1.dtype
    assert jnp.allclose(o1, r1, atol=1e-5, rtol=1e-5), "flat path mismatch"

    # 2) row-tiled halo path (the one used for large StyleGAN2 feature maps)
    x2 = jax.random.normal(k2, (1, 2, 64, 256), dtype=jnp.float32)
    o2 = jax.block_until_ready(blur(x2, block_h=16))
    r2 = _reference_blur(x2)
    assert o2.shape == x2.shape and o2.dtype == x2.dtype
    assert jnp.allclose(o2, r2, atol=1e-5, rtol=1e-5), "row-tiled path mismatch"

    # 3) tiny pyramid level -> channels folded onto the lane axis
    x3 = jax.random.normal(k3, (2, 8, 8, 8), dtype=jnp.float32)
    o3 = jax.block_until_ready(blur(x3))
    r3 = _reference_blur(x3)
    assert o3.shape == x3.shape and o3.dtype == x3.dtype
    assert jnp.allclose(o3, r3, atol=1e-5, rtol=1e-5), "channel-fold path mismatch"

    print("KERNEL_OK")
</pallas_src>

<mosaic_0001>
module attributes {stable_mosaic.version = 11 : i64} {
  func.func @kernel(%arg0: i32, %arg1: memref<8x256xf32, #tpu.memory_space<vmem>>, %arg2: memref<8x256xf32, #tpu.memory_space<vmem>>) attributes {dimension_semantics = [#tpu.dimension_semantics<parallel>], iteration_bounds = array<i64: 1>, scalar_prefetch = 0 : i64, scratch_operands = 0 : i64, tpu.core_type = #tpu.core_type<tc>, window_params = [{transform_indices = @transform_0, window_bounds = array<i64: 8, 256>}, {transform_indices = @transform_1, window_bounds = array<i64: 8, 256>}]} {
    %c0 = arith.constant 0 : index
    %c0_0 = arith.constant 0 : index
    %0 = vector.load %arg1[%c0, %c0_0] : memref<8x256xf32, #tpu.memory_space<vmem>>, vector<8x256xf32>
    %1 = tpu.iota {dimensions = array<i32: 1>} : vector<1x256xi32>
    %c15_i32 = arith.constant 15 : i32
    %2 = vector.broadcast %c15_i32 : i32 to vector<1x256xi32>
    %3 = arith.andi %1, %2 : vector<1x256xi32>
    %c0_i32 = arith.constant 0 : i32
    %4 = vector.broadcast %c0_i32 : i32 to vector<1x256xi32>
    %5 = arith.cmpi eq, %3, %4 : vector<1x256xi32>
    %c15_i32_1 = arith.constant 15 : i32
    %6 = vector.broadcast %c15_i32_1 : i32 to vector<1x256xi32>
    %7 = arith.cmpi eq, %3, %6 : vector<1x256xi32>
    %c16_i32 = arith.constant 16 : i32
    %8 = vector.broadcast %c16_i32 : i32 to vector<1x256xi32>
    %9 = arith.cmpi slt, %1, %8 : vector<1x256xi32>
    %c240_i32 = arith.constant 240 : i32
    %10 = vector.broadcast %c240_i32 : i32 to vector<1x256xi32>
    %11 = arith.cmpi sge, %1, %10 : vector<1x256xi32>
    %c1_i32 = arith.constant 1 : i32
    %12 = tpu.dynamic_rotate %0 by %c1_i32 dim 1 : vector<8x256xf32>, i32 -> vector<8x256xf32>
    %c255_i32 = arith.constant 255 : i32
    %13 = tpu.dynamic_rotate %0 by %c255_i32 dim 1 : vector<8x256xf32>, i32 -> vector<8x256xf32>
    %14 = vector.shape_cast %5 : vector<1x256xi1> to vector<1x256xi1>
    %15 = vector.broadcast %14 : vector<1x256xi1> to vector<8x256xi1>
    %16 = arith.select %15, %13, %12 : vector<8x256xi1>, vector<8x256xf32>
    %17 = vector.shape_cast %7 : vector<1x256xi1> to vector<1x256xi1>
    %18 = vector.broadcast %17 : vector<1x256xi1> to vector<8x256xi1>
    %19 = arith.select %18, %12, %13 : vector<8x256xi1>, vector<8x256xf32>
    %20 = arith.addf %16, %0 : vector<8x256xf32>
    %21 = arith.addf %20, %0 : vector<8x256xf32>
    %22 = arith.addf %21, %19 : vector<8x256xf32>
    %c16_i32_2 = arith.constant 16 : i32
    %23 = tpu.dynamic_rotate %22 by %c16_i32_2 dim 1 : vector<8x256xf32>, i32 -> vector<8x256xf32>
    %c240_i32_3 = arith.constant 240 : i32
    %24 = tpu.dynamic_rotate %22 by %c240_i32_3 dim 1 : vector<8x256xf32>, i32 -> vector<8x256xf32>
    %25 = vector.shape_cast %9 : vector<1x256xi1> to vector<1x256xi1>
    %26 = vector.broadcast %25 : vector<1x256xi1> to vector<8x256xi1>
    %27 = arith.select %26, %24, %23 : vector<8x256xi1>, vector<8x256xf32>
    %28 = vector.shape_cast %11 : vector<1x256xi1> to vector<1x256xi1>
    %29 = vector.broadcast %28 : vector<1x256xi1> to vector<8x256xi1>
    %30 = arith.select %29, %23, %24 : vector<8x256xi1>, vector<8x256xf32>
    %31 = arith.addf %27, %22 : vector<8x256xf32>
    %32 = arith.addf %31, %22 : vector<8x256xf32>
    %33 = arith.addf %32, %30 : vector<8x256xf32>
    %cst = arith.constant 6.250000e-02 : f32
    %34 = vector.broadcast %cst : f32 to vector<8x256xf32>
    %35 = arith.mulf %33, %34 : vector<8x256xf32>
    %c0_4 = arith.constant 0 : index
    %c0_5 = arith.constant 0 : index
    %36 = vector.load %arg2[%c0_4, %c0_5] : memref<8x256xf32, #tpu.memory_space<vmem>>, vector<8x256xf32>
    tpu.vector_store %arg2[%c0_4, %c0_5], %35 {strides = array<i32>} : memref<8x256xf32, #tpu.memory_space<vmem>>, vector<8x256xf32>,
    return
  }
  func.func @transform_0(%arg0: i32) -> (i32, i32) {
    %c0_i32 = arith.constant 0 : i32
    %c0_i32_0 = arith.constant 0 : i32
    return %arg0, %c0_i32 : i32, i32
  }
  func.func @transform_1(%arg0: i32) -> (i32, i32) {
    %c0_i32 = arith.constant 0 : i32
    %c0_i32_0 = arith.constant 0 : i32
    return %arg0, %c0_i32 : i32, i32
  }
}

</mosaic_0001>

<llo_original>
// kernel: blur.1
$region0: #{blur.1}
  #allocation0 [shape = 'u32[]', space=smem, size = 0x4, offset = 0x4, fixed_abs, tag = 'smem constant byte address 0x4 - core index']
  #allocation1 [shape = 'u32[144,128]{1,0:T(1,128)}', space=vmem, size = 0x12000, scoped, tag = 'internal scratch']
  %s0 = inlined_call_operand.vmem [shape: f32[8,256], index: 0, kind: input, shape index: {}]
  %s1 = inlined_call_operand.vmem [shape: f32[8,256], index: 1, kind: output, shape index: {}]
  %s2 = sld [smem:[#allocation0]]
  $region14: #{blur.1} parent=0
    _
  %s4 = ssub.s32 1, %s2
  %s5 = scalar_select 0, %s4, %s2
  // Predicated region
  $region2: #{blur.1} parent=0 // pred_check
    _
  $region3: #{blur.1} parent=0 // pred_check_branch
    %7 = sbr.rel (0) target = $region5
  $region4: #{blur.1} parent=0 // pred_region
    _
  $region5: #{blur.1} parent=0 // pred_fallthru
    _
  %v8 = vld [vmem:[%s0] sm:$0xff]
  %v9 = vld [vmem:[%s0 + $0x8] sm:$0xff]
  %v10 = vlaneseq
  %v11 = vand.u32 %v10, 127
  %v12 = vadd.s32 %v11, 128
  %v13 = vand.u32 %v11, 15
  %v14 = vand.u32 %v12, 15
  %vm15 = vcmp.eq.s32.totalorder %v13, 0
  %vm16 = vcmp.eq.s32.totalorder %v14, 0
  %vm17 = vcmp.eq.s32.totalorder %v13, 15
  %vm18 = vcmp.eq.s32.totalorder %v14, 15
  %vm19 = vcmp.lt.s32.totalorder %v11, 16
  %vm20 = vcmp.lt.s32.totalorder %v12, 16
  %vm21 = vcmp.ge.s32.totalorder %v11, 240
  %vm22 = vcmp.ge.s32.totalorder %v12, 240
  %23 = vrot.lane.b32.xlu0 %v8, 1
  %v24 = vpop.permute.xlu0 %23
  %25 = vrot.lane.b32.xlu0 %v9, 1
  %v26 = vpop.permute.xlu0 %25
  %vm27 = vcmp.lt.s32.totalorder %v11, 1
  %v28 = vsel %vm27, %v24, %v26
  %v29 = vsel %vm27, %v26, %v24
  %30 = vrot.lane.b32.xlu0 %v8, 127
  %v31 = vpop.permute.xlu0 %30
  %32 = vrot.lane.b32.xlu0 %v9, 127
  %v33 = vpop.permute.xlu0 %32
  %vm34 = vcmp.lt.s32.totalorder %v11, 127
  %v35 = vsel %vm34, %v31, %v33
  %v36 = vsel %vm34, %v33, %v31
  %v37 = vsel %vm15, 1, 0
  %v38 = vsel %vm16, 1, 0
  %vm39 = vcmp.eq.s32.totalorder %v37, 1
  %vm40 = vcmp.eq.s32.totalorder %v38, 1
  %v41 = vsel %vm39, %v35, %v29
  %v42 = vsel %vm40, %v36, %v28
  %v43 = vsel %vm17, 1, 0
  %v44 = vsel %vm18, 1, 0
  %vm45 = vcmp.eq.s32.totalorder %v43, 1
  %vm46 = vcmp.eq.s32.totalorder %v44, 1
  %v47 = vsel %vm45, %v29, %v35
  %v48 = vsel %vm46, %v28, %v36
  %v49 = vadd.f32 %v41, %v8
  %v50 = vadd.f32 %v42, %v9
  %v51 = vadd.f32 %v49, %v8
  %v52 = vadd.f32 %v50, %v9
  %v53 = vadd.f32 %v51, %v47
  %v54 = vadd.f32 %v52, %v48
  %55 = vrot.lane.b32.xlu0 %v53, 16
  %v56 = vpop.permute.xlu0 %55
  %57 = vrot.lane.b32.xlu0 %v54, 16
  %v58 = vpop.permute.xlu0 %57
  %v59 = vsel %vm19, %v56, %v58
  %v60 = vsel %vm19, %v58, %v56
  %61 = vrot.lane.b32.xlu0 %v53, 112
  %v62 = vpop.permute.xlu0 %61
  %63 = vrot.lane.b32.xlu0 %v54, 112
  %v64 = vpop.permute.xlu0 %63
  %vm65 = vcmp.lt.s32.totalorder %v11, 112
  %v66 = vsel %vm65, %v62, %v64
  %v67 = vsel %vm65, %v64, %v62
  %v68 = vsel %vm19, 1, 0
  %v69 = vsel %vm20, 1, 0
  %vm70 = vcmp.eq.s32.totalorder %v68, 1
  %vm71 = vcmp.eq.s32.totalorder %v69, 1
  %v72 = vsel %vm70, %v66, %v60
  %v73 = vsel %vm71, %v67, %v59
  %v74 = vsel %vm21, 1, 0
  %v75 = vsel %vm22, 1, 0
  %vm76 = vcmp.eq.s32.totalorder %v74, 1
  %vm77 = vcmp.eq.s32.totalorder %v75, 1
  %v78 = vsel %vm76, %v60, %v66
  %v79 = vsel %vm77, %v59, %v67
  %v80 = vadd.f32 %v72, %v53
  %v81 = vadd.f32 %v73, %v54
  %v82 = vadd.f32 %v80, %v53
  %v83 = vadd.f32 %v81, %v54
  %v84 = vadd.f32 %v82, %v78
  %v85 = vadd.f32 %v83, %v79
  %v86 = vmul.f32 %v84, 0.0625
  %v87 = vmul.f32 %v85, 0.0625
  %88 = vst [vmem:[%s1] sm:$0xff] %v86
  %89 = vst [vmem:[%s1 + $0x8] sm:$0xff] %v87
  // Predicated region
  $region6: #{blur.1} parent=0 // pred_check
    _
  $region7: #{blur.1} parent=0 // pred_check_branch
    %91 = sbr.rel (0) target = $region9
  $region8: #{blur.1} parent=0 // pred_region
    _
  $region9: #{blur.1} parent=0 // pred_fallthru
    _
  // Predicated region
  $region10: #{blur.1} parent=0 // pred_check
    _
  $region11: #{blur.1} parent=0 // pred_check_branch
    %93 = sbr.rel (0) target = $region13
  $region12: #{blur.1} parent=0 // pred_region
    _
  $region13: #{blur.1} parent=0 // pred_fallthru
    _

</llo_original>
